<compile_context>
chip_gen: v7x
topology: tpu7x:2x2x1
jax: 0.10.0
libtpu: 0.0.40
codegen_flags: <defaults>
</compile_context>

<pallas_src>
import functools

import jax
import jax.numpy as jnp
from jax import lax
from jax.experimental import pallas as pl
from jax.experimental.pallas import tpu as pltpu


def _round_up(x, m):
    return (x + m - 1) // m * m


def _pick_out_tile(hw_pad, cw_rows, h_in, w_pad):
    """Largest lane-dense output tile that divides the padded output length and keeps
    the per-tile f32 intermediates (rowsamp + one-hot weights/iotas) within ~6 MiB."""
    budget = 6 * 1024 * 1024
    for t in (1024, 512, 256, 128):
        if hw_pad % t == 0 and (cw_rows * 4 + (h_in + w_pad) * 16) * t <= budget:
            return t
    return 128  # hw_pad is always a multiple of 128


def _warp_kernel(img_ref, flow_ref, warp_ref, mask_ref, *,
                 C, H_in, W_in, W_pad, W_out, T, sx, sy, xmax_out, ymax_out):
    # img_ref : (C*W_pad, H_in) bf16  image; rows = (channel, column), cols = image row
    # flow_ref: (2, T) f32            optical flow (u, v) for this output-pixel tile
    # warp_ref: (C, T)   mask_ref: (1, T)
    t = pl.program_id(1)

    # Base pixel coordinates of this output tile, built in-kernel (no HBM grid input).
    j = lax.broadcasted_iota(jnp.int32, (1, T), 1).astype(jnp.float32)
    o = (t * T).astype(jnp.float32) + j                 # flat output-pixel index (exact)
    # Exact f32 floor-division by W_out (the +0.5 keeps floor exact for HW < ~2M px).
    gy = jnp.floor((o + 0.5) * (1.0 / W_out))
    gx = o - gy * W_out

    u = flow_ref[0:1, :]
    v = flow_ref[1:2, :]
    fx = gx + u                                         # sample coords, flow-grid pixels
    fy = gy + v

    # ---------- bilinear sample of the (H_in, W_in) image, padding_mode='border' ----
    ix = fx * sx                                        # rescale to image pixels
    iy = fy * sy
    ixc = jnp.clip(ix, 0.0, float(W_in - 1))
    iyc = jnp.clip(iy, 0.0, float(H_in - 1))
    x0 = jnp.floor(ixc)
    y0 = jnp.floor(iyc)
    wx1 = ixc - x0
    wx0 = 1.0 - wx1
    wy1 = iyc - y0
    wy0 = 1.0 - wy1
    x1 = jnp.minimum(x0 + 1.0, float(W_in - 1))
    y1 = jnp.minimum(y0 + 1.0, float(H_in - 1))
    x0i = x0.astype(jnp.int32)
    x1i = x1.astype(jnp.int32)
    y0i = y0.astype(jnp.int32)
    y1i = y1.astype(jnp.int32)

    # Stage 1: separable row gather — one-hot y-weight matrix contracted on the MXU.
    hh = lax.broadcasted_iota(jnp.int32, (H_in, T), 0)
    ry = (jnp.where(hh == y0i, wy0, 0.0)
          + jnp.where(hh == y1i, wy1, 0.0)).astype(jnp.bfloat16)             # (H_in, T)
    rowsamp = jnp.dot(img_ref[...], ry,
                      preferred_element_type=jnp.float32)                    # (C*W_pad, T)

    # Stage 2: column select + reduce over W_pad on the VPU/XLU (f32).
    # Padded columns (w >= W_in) never match x0i/x1i (both clipped to W_in-1) -> weight 0.
    ww = lax.broadcasted_iota(jnp.int32, (W_pad, T), 0)
    cx = jnp.where(ww == x0i, wx0, 0.0) + jnp.where(ww == x1i, wx1, 0.0)     # (W_pad, T)
    chans = []
    for c in range(C):                                   # C is small; unrolled
        blk = rowsamp[c * W_pad:(c + 1) * W_pad, :]      # (W_pad, T), sublane-aligned
        chans.append(jnp.sum(blk * cx, axis=0, keepdims=True))
    warp_ref[...] = jnp.concatenate(chans, axis=0).astype(warp_ref.dtype)

    # ---------- mask: nearest / padding_mode='zeros' on ones (flow resolution) -------
    fxn = jnp.round(fx)                                  # half-to-even == nearbyint
    fyn = jnp.round(fy)
    inb = ((fxn >= 0.0) & (fxn <= xmax_out) & (fyn >= 0.0) & (fyn <= ymax_out))
    mask_ref[...] = inb.astype(mask_ref.dtype)


def warp_with_flow(img, flow):
    """img: [B,C,H_in,W_in] f32, flow: [B,2,H_out,W_out] f32
       -> (warp [B,C,H_out,W_out], mask [B,1,H_out,W_out])."""
    B, C, H_in, W_in = img.shape
    _, _, H_out, W_out = flow.shape
    HW_out = H_out * W_out

    W_pad = _round_up(W_in, 8)            # sublane-align each channel's column block
    CW = C * W_pad
    HW_pad = _round_up(HW_out, 128)       # lane-dense output tiles for any H_out*W_out
    T = _pick_out_tile(HW_pad, CW, H_in, W_pad)
    n_tiles = HW_pad // T

    # Image arranged (B, C*W_pad, H_in) so the stage-1 row gather is one MXU contraction
    # over H_in; cast to bf16 once here (halves HBM traffic / VMEM double-buffer).
    img_cwh = jnp.transpose(img, (0, 1, 3, 2))                    # (B, C, W_in, H_in)
    if W_pad != W_in:
        img_cwh = jnp.pad(img_cwh, ((0, 0), (0, 0), (0, W_pad - W_in), (0, 0)))
    img_cwh = img_cwh.reshape(B, CW, H_in).astype(jnp.bfloat16)

    flow_f = flow.reshape(B, 2, HW_out).astype(jnp.float32)
    if HW_pad != HW_out:
        flow_f = jnp.pad(flow_f, ((0, 0), (0, 0), (0, HW_pad - HW_out)))

    sx = float(W_in - 1) / float(W_out - 1) if W_out > 1 else 1.0
    sy = float(H_in - 1) / float(H_out - 1) if H_out > 1 else 1.0

    kernel = functools.partial(
        _warp_kernel, C=C, H_in=H_in, W_in=W_in, W_pad=W_pad, W_out=W_out, T=T,
        sx=sx, sy=sy, xmax_out=float(W_out - 1), ymax_out=float(H_out - 1))

    warp, mask = pl.pallas_call(
        kernel,
        out_shape=(jax.ShapeDtypeStruct((B, C, HW_pad), img.dtype),
                   jax.ShapeDtypeStruct((B, 1, HW_pad), img.dtype)),
        grid_spec=pltpu.PrefetchScalarGridSpec(
            num_scalar_prefetch=0,
            grid=(B, n_tiles),
            in_specs=[
                pl.BlockSpec((None, CW, H_in), lambda b, t: (b, 0, 0)),  # whole image
                pl.BlockSpec((None, 2, T), lambda b, t: (b, 0, t)),      # flow tile
            ],
            out_specs=[
                pl.BlockSpec((None, C, T), lambda b, t: (b, 0, t)),
                pl.BlockSpec((None, 1, T), lambda b, t: (b, 0, t)),
            ]),
        compiler_params=pltpu.CompilerParams(
            dimension_semantics=("parallel", "parallel"),
            vmem_limit_bytes=48 * 1024 * 1024),
    )(img_cwh, flow_f)

    warp = warp[:, :, :HW_out].reshape(B, C, H_out, W_out)
    mask = mask[:, :, :HW_out].reshape(B, 1, H_out, W_out)
    return warp, mask


def view_synthesis_forward(rgbs, optical_flow, return_masks=True, tgt=(0, 0)):
    """Mirrors ViewSynthesis.forward for the optical-flow branch.
    All context views share the same flow-derived coords, so they are stacked along
    channels and warped with a single pallas_call (amortizes the gather weights)."""
    # TODO(synk): depth+camera branch needs the external Camera class; not implemented.
    context = [k for k in rgbs if k != tgt]
    num_scales = len(optical_flow)
    warps, masks = [], []
    for scale in range(num_scales):
        src = 0  # upsample_depth=True default
        imgs = [rgbs[ctx][src] for ctx in context]
        stacked = jnp.concatenate(imgs, axis=1)
        w_all, m = warp_with_flow(stacked, optical_flow[scale])
        sizes = [im.shape[1] for im in imgs]
        offs, acc = [], 0
        for s in sizes[:-1]:
            acc += s
            offs.append(acc)
        w_list = jnp.split(w_all, offs, axis=1) if offs else [w_all]
        warps.append(list(w_list))
        if return_masks:
            masks.append([m for _ in context])   # same coords -> same mask per context
    return {"warps": warps, "masks": masks if return_masks else None}


# ----------------------- pure-JAX reference (same math, f32) -----------------------
def _ref_warp_with_flow(img, flow):
    B, C, H_in, W_in = img.shape
    _, _, H_out, W_out = flow.shape
    gy, gx = jnp.meshgrid(jnp.arange(H_out, dtype=jnp.float32),
                          jnp.arange(W_out, dtype=jnp.float32), indexing="ij")
    fx = gx[None] + flow[:, 0]
    fy = gy[None] + flow[:, 1]
    sx = (W_in - 1.0) / (W_out - 1.0) if W_out > 1 else 1.0
    sy = (H_in - 1.0) / (H_out - 1.0) if H_out > 1 else 1.0
    ix = fx * sx
    iy = fy * sy
    ixc = jnp.clip(ix, 0.0, W_in - 1.0)
    iyc = jnp.clip(iy, 0.0, H_in - 1.0)
    x0f = jnp.floor(ixc)
    y0f = jnp.floor(iyc)
    wx1 = ixc - x0f
    wx0 = 1.0 - wx1
    wy1 = iyc - y0f
    wy0 = 1.0 - wy1
    x0 = x0f.astype(jnp.int32)
    y0 = y0f.astype(jnp.int32)
    x1 = jnp.minimum(x0 + 1, W_in - 1)
    y1 = jnp.minimum(y0 + 1, H_in - 1)
    imgf = img.reshape(B, C, H_in * W_in)

    def gather(yy, xx):
        idx = (yy * W_in + xx).reshape(B, 1, H_out * W_out)
        return jnp.take_along_axis(imgf, idx, axis=2).reshape(B, C, H_out, W_out)

    warp = (gather(y0, x0) * (wy0 * wx0)[:, None]
            + gather(y0, x1) * (wy0 * wx1)[:, None]
            + gather(y1, x0) * (wy1 * wx0)[:, None]
            + gather(y1, x1) * (wy1 * wx1)[:, None])
    fxn = jnp.round(fx)
    fyn = jnp.round(fy)
    mask = ((fxn >= 0.0) & (fxn <= W_out - 1.0)
            & (fyn >= 0.0) & (fyn <= H_out - 1.0)).astype(img.dtype)[:, None]
    return warp, mask


if __name__ == "__main__":
    key = jax.random.PRNGKey(0)
    B, C, H, W = 2, 3, 16, 24          # HW=384 -> three lane-dense output tiles of 128
    k1, k2, k3, k4, k5, k6 = jax.random.split(key, 6)

    rgbs = {
        (0, 0): [jax.random.uniform(k1, (B, C, H, W), dtype=jnp.float32)],  # target
        (0, 1): [jax.random.uniform(k2, (B, C, H, W), dtype=jnp.float32)],  # context
        (1, 1): [jax.random.uniform(k3, (B, C, H, W), dtype=jnp.float32)],  # context
    }
    # One scale of optical flow; amplitude large enough to push some samples OOB.
    optical_flow = [3.0 * jax.random.normal(k4, (B, 2, H, W), dtype=jnp.float32)]

    out = view_synthesis_forward(rgbs, optical_flow, return_masks=True, tgt=(0, 0))
    jax.block_until_ready(out)

    # sanity check vs pure-JAX f32 reference (kernel uses bf16 on the MXU -> ~1e-3 rel)
    context = [(0, 1), (1, 1)]
    for i, ctx in enumerate(context):
        ref_w, ref_m = _ref_warp_with_flow(rgbs[ctx][0], optical_flow[0])
        err = float(jnp.max(jnp.abs(out["warps"][0][i] - ref_w)))
        assert jnp.allclose(out["warps"][0][i], ref_w, atol=2e-2), err
        assert jnp.allclose(out["masks"][0][i], ref_m, atol=1e-6)

    # second config: flow at a lower resolution than the image, HW not a multiple of
    # 128 and W not a multiple of 8 (exercises the padding / rescale paths).
    img2 = jax.random.uniform(k5, (B, C, 16, 20), dtype=jnp.float32)
    flow2 = 2.0 * jax.random.normal(k6, (B, 2, 8, 12), dtype=jnp.float32)
    w2, m2 = warp_with_flow(img2, flow2)
    jax.block_until_ready((w2, m2))
    ref_w2, ref_m2 = _ref_warp_with_flow(img2, flow2)
    err2 = float(jnp.max(jnp.abs(w2 - ref_w2)))
    assert jnp.allclose(w2, ref_w2, atol=2e-2), err2
    assert jnp.allclose(m2, ref_m2, atol=1e-6)

    print("KERNEL_OK")
</pallas_src>

<mosaic_0001>
module attributes {stable_mosaic.version = 11 : i64} {
  func.func @_warp_kernel(%arg0: i32, %arg1: i32, %arg2: memref<1x144x16xbf16, #tpu.memory_space<vmem>>, %arg3: memref<1x2x128xf32, #tpu.memory_space<vmem>>, %arg4: memref<1x6x128xf32, #tpu.memory_space<vmem>>, %arg5: memref<1x1x128xf32, #tpu.memory_space<vmem>>) attributes {dimension_semantics = [#tpu.dimension_semantics<parallel>, #tpu.dimension_semantics<parallel>], iteration_bounds = array<i64: 2, 3>, scalar_prefetch = 0 : i64, scratch_operands = 0 : i64, tpu.core_type = #tpu.core_type<tc>, window_params = [{transform_indices = @transform_0, window_bounds = array<i64: 1, 144, 16>}, {transform_indices = @transform_1, window_bounds = array<i64: 1, 2, 128>}, {transform_indices = @transform_2, window_bounds = array<i64: 1, 6, 128>}, {transform_indices = @transform_3, window_bounds = array<i64: 1, 1, 128>}]} {
    %0 = tpu.iota {dimensions = array<i32: 1>} : vector<1x128xi32>
    %1 = arith.sitofp %0 : vector<1x128xi32> to vector<1x128xf32>
    %c128_i32 = arith.constant 128 : i32
    %2 = arith.muli %arg1, %c128_i32 : i32
    %3 = arith.sitofp %2 : i32 to f32
    %4 = vector.broadcast %3 : f32 to vector<1x128xf32>
    %5 = arith.addf %4, %1 : vector<1x128xf32>
    %cst = arith.constant 5.000000e-01 : f32
    %6 = vector.broadcast %cst : f32 to vector<1x128xf32>
    %7 = arith.addf %5, %6 : vector<1x128xf32>
    %cst_0 = arith.constant 0.0416666679 : f32
    %8 = vector.broadcast %cst_0 : f32 to vector<1x128xf32>
    %9 = arith.mulf %7, %8 : vector<1x128xf32>
    %10 = math.floor %9 : vector<1x128xf32>
    %cst_1 = arith.constant 2.400000e+01 : f32
    %11 = vector.broadcast %cst_1 : f32 to vector<1x128xf32>
    %12 = arith.mulf %10, %11 : vector<1x128xf32>
    %13 = arith.subf %5, %12 : vector<1x128xf32>
    %c0 = arith.constant 0 : index
    %c0_2 = arith.constant 0 : index
    %c0_3 = arith.constant 0 : index
    %14 = vector.load %arg3[%c0, %c0_2, %c0_3] : memref<1x2x128xf32, #tpu.memory_space<vmem>>, vector<1x1x128xf32>
    %15 = vector.shape_cast %14 : vector<1x1x128xf32> to vector<1x128xf32>
    %c0_4 = arith.constant 0 : index
    %c1 = arith.constant 1 : index
    %c0_5 = arith.constant 0 : index
    %16 = vector.load %arg3[%c0_4, %c1, %c0_5] : memref<1x2x128xf32, #tpu.memory_space<vmem>>, vector<1x1x128xf32>
    %17 = vector.shape_cast %16 : vector<1x1x128xf32> to vector<1x128xf32>
    %18 = arith.addf %13, %15 : vector<1x128xf32>
    %19 = arith.addf %10, %17 : vector<1x128xf32>
    %cst_6 = arith.constant 1.000000e+00 : f32
    %20 = vector.broadcast %cst_6 : f32 to vector<1x128xf32>
    %21 = arith.mulf %18, %20 : vector<1x128xf32>
    %cst_7 = arith.constant 1.000000e+00 : f32
    %22 = vector.broadcast %cst_7 : f32 to vector<1x128xf32>
    %23 = arith.mulf %19, %22 : vector<1x128xf32>
    %cst_8 = arith.constant 0.000000e+00 : f32
    %cst_9 = arith.constant 2.300000e+01 : f32
    %24 = vector.broadcast %cst_8 : f32 to vector<1x128xf32>
    %25 = arith.maximumf %24, %21 : vector<1x128xf32>
    %26 = vector.broadcast %cst_9 : f32 to vector<1x128xf32>
    %27 = arith.minimumf %26, %25 : vector<1x128xf32>
    %cst_10 = arith.constant 0.000000e+00 : f32
    %cst_11 = arith.constant 1.500000e+01 : f32
    %28 = vector.broadcast %cst_10 : f32 to vector<1x128xf32>
    %29 = arith.maximumf %28, %23 : vector<1x128xf32>
    %30 = vector.broadcast %cst_11 : f32 to vector<1x128xf32>
    %31 = arith.minimumf %30, %29 : vector<1x128xf32>
    %32 = math.floor %27 : vector<1x128xf32>
    %33 = math.floor %31 : vector<1x128xf32>
    %34 = arith.subf %27, %32 : vector<1x128xf32>
    %cst_12 = arith.constant 1.000000e+00 : f32
    %35 = vector.broadcast %cst_12 : f32 to vector<1x128xf32>
    %36 = arith.subf %35, %34 : vector<1x128xf32>
    %37 = arith.subf %31, %33 : vector<1x128xf32>
    %cst_13 = arith.constant 1.000000e+00 : f32
    %38 = vector.broadcast %cst_13 : f32 to vector<1x128xf32>
    %39 = arith.subf %38, %37 : vector<1x128xf32>
    %cst_14 = arith.constant 1.000000e+00 : f32
    %40 = vector.broadcast %cst_14 : f32 to vector<1x128xf32>
    %41 = arith.addf %32, %40 : vector<1x128xf32>
    %cst_15 = arith.constant 2.300000e+01 : f32
    %42 = vector.broadcast %cst_15 : f32 to vector<1x128xf32>
    %43 = arith.minimumf %41, %42 : vector<1x128xf32>
    %cst_16 = arith.constant 1.000000e+00 : f32
    %44 = vector.broadcast %cst_16 : f32 to vector<1x128xf32>
    %45 = arith.addf %33, %44 : vector<1x128xf32>
    %cst_17 = arith.constant 1.500000e+01 : f32
    %46 = vector.broadcast %cst_17 : f32 to vector<1x128xf32>
    %47 = arith.minimumf %45, %46 : vector<1x128xf32>
    %48 = arith.fptosi %32 : vector<1x128xf32> to vector<1x128xi32>
    %49 = arith.fptosi %43 : vector<1x128xf32> to vector<1x128xi32>
    %50 = arith.fptosi %33 : vector<1x128xf32> to vector<1x128xi32>
    %51 = arith.fptosi %47 : vector<1x128xf32> to vector<1x128xi32>
    %52 = tpu.iota {dimensions = array<i32: 0>} : vector<16x128xi32>
    %53 = vector.broadcast %50 : vector<1x128xi32> to vector<16x128xi32>
    %54 = arith.cmpi eq, %52, %53 : vector<16x128xi32>
    %cst_18 = arith.constant 0.000000e+00 : f32
    %55 = vector.shape_cast %39 : vector<1x128xf32> to vector<1x128xf32>
    %56 = vector.broadcast %55 : vector<1x128xf32> to vector<16x128xf32>
    %57 = vector.broadcast %cst_18 : f32 to vector<16x128xf32>
    %58 = arith.select %54, %56, %57 : vector<16x128xi1>, vector<16x128xf32>
    %59 = vector.broadcast %51 : vector<1x128xi32> to vector<16x128xi32>
    %60 = arith.cmpi eq, %52, %59 : vector<16x128xi32>
    %cst_19 = arith.constant 0.000000e+00 : f32
    %61 = vector.shape_cast %37 : vector<1x128xf32> to vector<1x128xf32>
    %62 = vector.broadcast %61 : vector<1x128xf32> to vector<16x128xf32>
    %63 = vector.broadcast %cst_19 : f32 to vector<16x128xf32>
    %64 = arith.select %60, %62, %63 : vector<16x128xi1>, vector<16x128xf32>
    %65 = arith.addf %58, %64 : vector<16x128xf32>
    %66 = arith.truncf %65 : vector<16x128xf32> to vector<16x128xbf16>
    %c0_20 = arith.constant 0 : index
    %c0_21 = arith.constant 0 : index
    %c0_22 = arith.constant 0 : index
    %67 = vector.load %arg2[%c0_20, %c0_21, %c0_22] : memref<1x144x16xbf16, #tpu.memory_space<vmem>>, vector<1x144x16xbf16>
    %68 = vector.shape_cast %67 : vector<1x144x16xbf16> to vector<144x16xbf16>
    %cst_23 = arith.constant dense<0.000000e+00> : vector<144x128xf32>
    %69 = tpu.matmul %68, %66, %cst_23 {dimension_numbers = #tpu.dot_dimension_numbers<[1], [0], [0], [1], [0, 0, 1, 1], [], []>} : vector<144x16xbf16>, vector<16x128xbf16>, vector<144x128xf32> -> vector<144x128xf32>
    %70 = tpu.iota {dimensions = array<i32: 0>} : vector<24x128xi32>
    %71 = vector.broadcast %48 : vector<1x128xi32> to vector<24x128xi32>
    %72 = arith.cmpi eq, %70, %71 : vector<24x128xi32>
    %cst_24 = arith.constant 0.000000e+00 : f32
    %73 = vector.shape_cast %36 : vector<1x128xf32> to vector<1x128xf32>
    %74 = vector.broadcast %73 : vector<1x128xf32> to vector<24x128xf32>
    %75 = vector.broadcast %cst_24 : f32 to vector<24x128xf32>
    %76 = arith.select %72, %74, %75 : vector<24x128xi1>, vector<24x128xf32>
    %77 = vector.broadcast %49 : vector<1x128xi32> to vector<24x128xi32>
    %78 = arith.cmpi eq, %70, %77 : vector<24x128xi32>
    %cst_25 = arith.constant 0.000000e+00 : f32
    %79 = vector.shape_cast %34 : vector<1x128xf32> to vector<1x128xf32>
    %80 = vector.broadcast %79 : vector<1x128xf32> to vector<24x128xf32>
    %81 = vector.broadcast %cst_25 : f32 to vector<24x128xf32>
    %82 = arith.select %78, %80, %81 : vector<24x128xi1>, vector<24x128xf32>
    %83 = arith.addf %76, %82 : vector<24x128xf32>
    %84 = vector.extract_strided_slice %69 {offsets = [0, 0], sizes = [24, 128], strides = [1, 1]} : vector<144x128xf32> to vector<24x128xf32>
    %85 = arith.mulf %84, %83 : vector<24x128xf32>
    %cst_26 = arith.constant dense<0.000000e+00> : vector<128xf32>
    %86 = vector.multi_reduction <add>, %85, %cst_26 [0] : vector<24x128xf32> to vector<128xf32>
    %87 = vector.shape_cast %86 : vector<128xf32> to vector<1x128xf32>
    %88 = vector.extract_strided_slice %69 {offsets = [24, 0], sizes = [24, 128], strides = [1, 1]} : vector<144x128xf32> to vector<24x128xf32>
    %89 = arith.mulf %88, %83 : vector<24x128xf32>
    %cst_27 = arith.constant dense<0.000000e+00> : vector<128xf32>
    %90 = vector.multi_reduction <add>, %89, %cst_27 [0] : vector<24x128xf32> to vector<128xf32>
    %91 = vector.shape_cast %90 : vector<128xf32> to vector<1x128xf32>
    %92 = vector.extract_strided_slice %69 {offsets = [48, 0], sizes = [24, 128], strides = [1, 1]} : vector<144x128xf32> to vector<24x128xf32>
    %93 = arith.mulf %92, %83 : vector<24x128xf32>
    %cst_28 = arith.constant dense<0.000000e+00> : vector<128xf32>
    %94 = vector.multi_reduction <add>, %93, %cst_28 [0] : vector<24x128xf32> to vector<128xf32>
    %95 = vector.shape_cast %94 : vector<128xf32> to vector<1x128xf32>
    %96 = vector.extract_strided_slice %69 {offsets = [72, 0], sizes = [24, 128], strides = [1, 1]} : vector<144x128xf32> to vector<24x128xf32>
    %97 = arith.mulf %96, %83 : vector<24x128xf32>
    %cst_29 = arith.constant dense<0.000000e+00> : vector<128xf32>
    %98 = vector.multi_reduction <add>, %97, %cst_29 [0] : vector<24x128xf32> to vector<128xf32>
    %99 = vector.shape_cast %98 : vector<128xf32> to vector<1x128xf32>
    %100 = vector.extract_strided_slice %69 {offsets = [96, 0], sizes = [24, 128], strides = [1, 1]} : vector<144x128xf32> to vector<24x128xf32>
    %101 = arith.mulf %100, %83 : vector<24x128xf32>
    %cst_30 = arith.constant dense<0.000000e+00> : vector<128xf32>
    %102 = vector.multi_reduction <add>, %101, %cst_30 [0] : vector<24x128xf32> to vector<128xf32>
    %103 = vector.shape_cast %102 : vector<128xf32> to vector<1x128xf32>
    %104 = vector.extract_strided_slice %69 {offsets = [120, 0], sizes = [24, 128], strides = [1, 1]} : vector<144x128xf32> to vector<24x128xf32>
    %105 = arith.mulf %104, %83 : vector<24x128xf32>
    %cst_31 = arith.constant dense<0.000000e+00> : vector<128xf32>
    %106 = vector.multi_reduction <add>, %105, %cst_31 [0] : vector<24x128xf32> to vector<128xf32>
    %107 = vector.shape_cast %106 : vector<128xf32> to vector<1x128xf32>
    %108 = tpu.concatenate %87, %91, %95, %99, %103, %107 in 0 : vector<1x128xf32>, vector<1x128xf32>, vector<1x128xf32>, vector<1x128xf32>, vector<1x128xf32>, vector<1x128xf32> -> vector<6x128xf32>
    %c0_32 = arith.constant 0 : index
    %c0_33 = arith.constant 0 : index
    %c0_34 = arith.constant 0 : index
    %109 = vector.load %arg4[%c0_32, %c0_33, %c0_34] : memref<1x6x128xf32, #tpu.memory_space<vmem>>, vector<1x6x128xf32>
    %110 = vector.shape_cast %109 : vector<1x6x128xf32> to vector<6x128xf32>
    %111 = vector.shape_cast %108 : vector<6x128xf32> to vector<1x6x128xf32>
    tpu.vector_store %arg4[%c0_32, %c0_33, %c0_34], %111 {strides = array<i32>} : memref<1x6x128xf32, #tpu.memory_space<vmem>>, vector<1x6x128xf32>,
    %112 = math.roundeven %18 : vector<1x128xf32>
    %113 = math.roundeven %19 : vector<1x128xf32>
    %cst_35 = arith.constant 0.000000e+00 : f32
    %114 = vector.broadcast %cst_35 : f32 to vector<1x128xf32>
    %115 = arith.cmpf oge, %112, %114 : vector<1x128xf32>
    %cst_36 = arith.constant 2.300000e+01 : f32
    %116 = vector.broadcast %cst_36 : f32 to vector<1x128xf32>
    %117 = arith.cmpf ole, %112, %116 : vector<1x128xf32>
    %118 = arith.andi %115, %117 : vector<1x128xi1>
    %cst_37 = arith.constant 0.000000e+00 : f32
    %119 = vector.broadcast %cst_37 : f32 to vector<1x128xf32>
    %120 = arith.cmpf oge, %113, %119 : vector<1x128xf32>
    %121 = arith.andi %118, %120 : vector<1x128xi1>
    %cst_38 = arith.constant 1.500000e+01 : f32
    %122 = vector.broadcast %cst_38 : f32 to vector<1x128xf32>
    %123 = arith.cmpf ole, %113, %122 : vector<1x128xf32>
    %124 = arith.andi %121, %123 : vector<1x128xi1>
    %125 = arith.extui %124 : vector<1x128xi1> to vector<1x128xi32>
    %126 = arith.sitofp %125 : vector<1x128xi32> to vector<1x128xf32>
    %c0_39 = arith.constant 0 : index
    %c0_40 = arith.constant 0 : index
    %c0_41 = arith.constant 0 : index
    %127 = vector.load %arg5[%c0_39, %c0_40, %c0_41] : memref<1x1x128xf32, #tpu.memory_space<vmem>>, vector<1x1x128xf32>
    %128 = vector.shape_cast %127 : vector<1x1x128xf32> to vector<1x128xf32>
    %129 = vector.shape_cast %126 : vector<1x128xf32> to vector<1x1x128xf32>
    tpu.vector_store %arg5[%c0_39, %c0_40, %c0_41], %129 {strides = array<i32>} : memref<1x1x128xf32, #tpu.memory_space<vmem>>, vector<1x1x128xf32>,
    return
  }
  func.func @transform_0(%arg0: i32, %arg1: i32) -> (i32, i32, i32) {
    %c0_i32 = arith.constant 0 : i32
    %c0_i32_0 = arith.constant 0 : i32
    %c0_i32_1 = arith.constant 0 : i32
    return %arg0, %c0_i32, %c0_i32_0 : i32, i32, i32
  }
  func.func @transform_1(%arg0: i32, %arg1: i32) -> (i32, i32, i32) {
    %c0_i32 = arith.constant 0 : i32
    %c0_i32_0 = arith.constant 0 : i32
    return %arg0, %c0_i32, %arg1 : i32, i32, i32
  }
  func.func @transform_2(%arg0: i32, %arg1: i32) -> (i32, i32, i32) {
    %c0_i32 = arith.constant 0 : i32
    %c0_i32_0 = arith.constant 0 : i32
    return %arg0, %c0_i32, %arg1 : i32, i32, i32
  }
  func.func @transform_3(%arg0: i32, %arg1: i32) -> (i32, i32, i32) {
    %c0_i32 = arith.constant 0 : i32
    %c0_i32_0 = arith.constant 0 : i32
    return %arg0, %c0_i32, %arg1 : i32, i32, i32
  }
}

</mosaic_0001>

<llo_original>
// kernel: tpu_custom_call.1
$region0: #{tpu_custom_call.1}
  #allocation0 [shape = 'u32[]', space=smem, size = 0x4, offset = 0x4, fixed_abs, tag = 'smem constant byte address 0x4 - core index']
  #allocation1 [shape = 'u32[144,128]{1,0:T(1,128)}', space=vmem, size = 0x12000, scoped, tag = 'internal scratch']
  %s0 = inlined_call_operand.vmem [shape: bf16[2,144,16], index: 0, kind: input, shape index: {}]
  %s1 = inlined_call_operand.vmem [shape: f32[2,2,384], index: 1, kind: input, shape index: {}]
  %s2 = inlined_call_operand.vmem [shape: f32[2,6,384], index: 2, kind: output, shape index: {0}]
  %s3 = inlined_call_operand.hbm [shape: f32[2,1,384], index: 3, kind: output, shape index: {1}]
  %4 = xla_tuple %s2, %s3
  %s5 = sld [smem:[#allocation0]]
  $region49: #{tpu_custom_call.1} parent=0
    _
  %s7 = ssub.s32 1, %s5
  %s8 = scalar_select 0, %s7, %s5
  $region1: #{tpu_custom_call.1} parent=0
    #allocation2 [shape = 'u8[1024]{0}', space=vmem, size = 0x400, scoped, tag = 'output window, operand 1']
    #allocation3 [shape = 's32[2]{0}', space=sflag, size = 0x8, scoped, tag = 'scoped memory for tpu_custom_call.1']
    %9 = vsyncpa [#allocation3], 0
    %s10 = scalar_lea.sflag [#allocation3], 1
    %11 = vsyncpa %s10, 0
    loop: start=0, step=1, limit=8
    $region2: #{tpu_custom_call.1} parent=1 // loop_pre_header
      _
    $region3: #{tpu_custom_call.1} parent=1 // loop_header
      %s13 = sphi 0, %s17
      %p14 = scmp.ge.s32.totalorder %s13, 8
      %s20 = sphi 0, %s32
      %s21 = sphi 0, %s28
      %s22 = sphi 0, %s20
      %s23 = sphi 0, %s21
      %s24 = sphi 0, %s22
      %s25 = sphi 0, %s23
      %s35 = sphi 0, %s37
      %s38 = sphi 0, %s35
      %s39 = sphi 0, %s38
      %s55 = sphi 0, %s39
      %s63 = sphi 0, %s65
      %s66 = sphi 0, %s63
      %s67 = sphi 0, %s66
      %s83 = sphi 0, %s67
      %s91 = sphi 0, %s93
      %s94 = sphi 0, %s91
      %s95 = sphi 0, %s94
      %s111 = sphi 0, %s95
      %s119 = sphi 0, %s121
      %s122 = sphi 0, %s119
      %s123 = sphi 0, %s122
      %s139 = sphi 0, %s123
    $region4: #{tpu_custom_call.1} parent=1 // loop_header_branch
      %16 = sbr.rel (%p14) target = $region8
    $region5: #{tpu_custom_call.1} parent=1 // loop_body
      %s18 = ssub.s32 %s13, 1
      %s19 = ssub.s32 %s13, 2
      %s26 = sadd.s32 1, %s21
      %p27 = scmp.ge.s32.totalorder %s26, 3
      %s28 = scalar_select %p27, 0, %s26
      %s29 = sadd.s32 1, %s20
      %s30 = scalar_select %p27, %s29, %s20
      %p31 = scmp.ge.s32.totalorder %s30, 2
      %s32 = scalar_select %p31, 0, %s30
      %s33 = ssub.s32 %s20, %s32
      %p34 = scmp.eq.s32.totalorder %s33, 0
      %s36 = sadd.s32 %s35, 1
      %s37 = scalar_select %p34, %s35, %s36
      %p40 = pneg %p34
      %p41 = scmp.eq.s32.totalorder %s13, 5
      %p42 = por %p40, %p41
      %p43 = scmp.ne.s32.totalorder %s35, %s38
      %p44 = scmp.eq.s32.totalorder %s13, 0
      %p45 = por %p43, %p44
      %p46 = scmp.ne.s32.totalorder %s35, %s38
      %p47 = scmp.eq.s32.totalorder %s18, 5
      %p48 = por %p46, %p47
      %p49 = scmp.ne.s32.totalorder %s38, %s39
      %p50 = scmp.eq.s32.totalorder %s18, 0
      %p51 = por %p49, %p50
      %p52 = scmp.ne.s32.totalorder %s38, %s39
      %p53 = scmp.eq.s32.totalorder %s19, 5
      %p54 = por %p52, %p53
      %p56 = scmp.ne.s32.totalorder %s39, %s55
      %p57 = scmp.eq.s32.totalorder %s19, 0
      %p58 = por %p56, %p57
      %s59 = ssub.s32 %s20, %s32
      %s60 = ssub.s32 %s21, %s28
      %s61 = sor.u32 %s59, %s60
      %p62 = scmp.eq.s32.totalorder %s61, 0
      %s64 = sadd.s32 %s63, 1
      %s65 = scalar_select %p62, %s63, %s64
      %p68 = pneg %p62
      %p69 = scmp.eq.s32.totalorder %s13, 5
      %p70 = por %p68, %p69
      %p71 = scmp.ne.s32.totalorder %s63, %s66
      %p72 = scmp.eq.s32.totalorder %s13, 0
      %p73 = por %p71, %p72
      %p74 = scmp.ne.s32.totalorder %s63, %s66
      %p75 = scmp.eq.s32.totalorder %s18, 5
      %p76 = por %p74, %p75
      %p77 = scmp.ne.s32.totalorder %s66, %s67
      %p78 = scmp.eq.s32.totalorder %s18, 0
      %p79 = por %p77, %p78
      %p80 = scmp.ne.s32.totalorder %s66, %s67
      %p81 = scmp.eq.s32.totalorder %s19, 5
      %p82 = por %p80, %p81
      %p84 = scmp.ne.s32.totalorder %s67, %s83
      %p85 = scmp.eq.s32.totalorder %s19, 0
      %p86 = por %p84, %p85
      %s87 = ssub.s32 %s20, %s32
      %s88 = ssub.s32 %s21, %s28
      %s89 = sor.u32 %s87, %s88
      %p90 = scmp.eq.s32.totalorder %s89, 0
      %s92 = sadd.s32 %s91, 1
      %s93 = scalar_select %p90, %s91, %s92
      %p96 = pneg %p90
      %p97 = scmp.eq.s32.totalorder %s13, 5
      %p98 = por %p96, %p97
      %p99 = scmp.ne.s32.totalorder %s91, %s94
      %p100 = scmp.eq.s32.totalorder %s13, 0
      %p101 = por %p99, %p100
      %p102 = scmp.ne.s32.totalorder %s91, %s94
      %p103 = scmp.eq.s32.totalorder %s18, 5
      %p104 = por %p102, %p103
      %p105 = scmp.ne.s32.totalorder %s94, %s95
      %p106 = scmp.eq.s32.totalorder %s18, 0
      %p107 = por %p105, %p106
      %p108 = scmp.ne.s32.totalorder %s94, %s95
      %p109 = scmp.eq.s32.totalorder %s19, 5
      %p110 = por %p108, %p109
      %p112 = scmp.ne.s32.totalorder %s95, %s111
      %p113 = scmp.eq.s32.totalorder %s19, 0
      %p114 = por %p112, %p113
      %s115 = ssub.s32 %s20, %s32
      %s116 = ssub.s32 %s21, %s28
      %s117 = sor.u32 %s115, %s116
      %p118 = scmp.eq.s32.totalorder %s117, 0
      %s120 = sadd.s32 %s119, 1
      %s121 = scalar_select %p118, %s119, %s120
      %p124 = pneg %p118
      %p125 = scmp.eq.s32.totalorder %s13, 5
      %p126 = por %p124, %p125
      %p127 = scmp.ne.s32.totalorder %s119, %s122
      %p128 = scmp.eq.s32.totalorder %s13, 0
      %p129 = por %p127, %p128
      %p130 = scmp.ne.s32.totalorder %s119, %s122
      %p131 = scmp.eq.s32.totalorder %s18, 5
      %p132 = por %p130, %p131
      %p133 = scmp.ne.s32.totalorder %s122, %s123
      %p134 = scmp.eq.s32.totalorder %s18, 0
      %p135 = por %p133, %p134
      %p136 = scmp.ne.s32.totalorder %s122, %s123
      %p137 = scmp.eq.s32.totalorder %s19, 5
      %p138 = por %p136, %p137
      %p140 = scmp.ne.s32.totalorder %s123, %s139
      %p141 = scmp.eq.s32.totalorder %s19, 0
      %p142 = por %p140, %p141
      %p143 = scmp.le.s32.totalorder 1, %s13
      %p144 = scmp.lt.s32.totalorder %s13, 7
      %p145 = pnand %p143, %p144
      %p146 = pneg %p145
      // Predicated region
      $region9: #{tpu_custom_call.1} parent=5 // pred_check
        _
      $region10: #{tpu_custom_call.1} parent=5 // pred_check_branch
        %148 = sbr.rel (%p145) target = $region12
      $region11: #{tpu_custom_call.1} parent=5 // pred_region
        %s149 = ssub.s32 %s13, 1
      $region12: #{tpu_custom_call.1} parent=5 // pred_fallthru
        _
      %p150 = scmp.lt.s32.totalorder %s13, 6
      // Predicated region
      $region13: #{tpu_custom_call.1} parent=5 // pred_check
        %p151 = pneg %p150
      $region14: #{tpu_custom_call.1} parent=5 // pred_check_branch
        %153 = sbr.rel (%p151) target = $region16
      $region15: #{tpu_custom_call.1} parent=5 // pred_region
        // Predicated region
        $region17: #{tpu_custom_call.1} parent=15 // pred_check
          %p154 = pneg %p45
        $region18: #{tpu_custom_call.1} parent=15 // pred_check_branch
          %156 = sbr.rel (%p154) target = $region20
        $region19: #{tpu_custom_call.1} parent=15 // pred_region
          %p157 = scmp.lt.s32.totalorder %s20, 1
          %s158 = scalar_select %p157, %s20, 1
          %s159 = smul.addr %s158, 18
          %s160 = smul.addr %s159, 4
          %s161 = scalar_lea.vmem %s0, %s160
        $region20: #{tpu_custom_call.1} parent=15 // pred_fallthru
          _
        // Predicated region
        $region21: #{tpu_custom_call.1} parent=15 // pred_check
          %p162 = pneg %p73
        $region22: #{tpu_custom_call.1} parent=15 // pred_check_branch
          %164 = sbr.rel (%p162) target = $region24
        $region23: #{tpu_custom_call.1} parent=15 // pred_region
          %p165 = scmp.lt.s32.totalorder %s20, 1
          %s166 = scalar_select %p165, %s20, 1
          %p167 = scmp.lt.s32.totalorder %s21, 2
          %s168 = scalar_select %p167, %s21, 2
          %s169 = smul.addr %s166, 3
          %s170 = sadd.s32 %s168, %s169
          %s171 = smul.addr %s170, 2
          %s172 = scalar_lea.vmem %s1, %s171
        $region24: #{tpu_custom_call.1} parent=15 // pred_fallthru
          _
      $region16: #{tpu_custom_call.1} parent=5 // pred_fallthru
        _
      %p173 = scmp.le.s32.totalorder 1, %s13
      %p174 = scmp.lt.s32.totalorder %s13, 7
      %p175 = pnand %p173, %p174
      %p176 = pneg %p175
      // Predicated region
      $region25: #{tpu_custom_call.1} parent=5 // pred_check
        _
      $region26: #{tpu_custom_call.1} parent=5 // pred_check_branch
        %178 = sbr.rel (%p175) target = $region28
      $region27: #{tpu_custom_call.1} parent=5 // pred_region
        %s179 = ssub.s32 %s13, 1
        %p180 = scmp.lt.s32.totalorder %s22, 1
        %s181 = scalar_select %p180, %s22, 1
        %s182 = smul.addr %s181, 18
        %s183 = smul.addr %s182, 4
        %s184 = scalar_lea.vmem %s0, %s183
        %p185 = pneg %p51
        %p186 = pneg %p48
        %p187 = scmp.lt.s32.totalorder %s22, 1
        %s188 = scalar_select %p187, %s22, 1
        %p189 = scmp.lt.s32.totalorder %s23, 2
        %s190 = scalar_select %p189, %s23, 2
        %s191 = smul.addr %s188, 3
        %s192 = sadd.s32 %s190, %s191
        %s193 = smul.addr %s192, 2
        %s194 = scalar_lea.vmem %s1, %s193
        %p195 = pneg %p79
        %p196 = pneg %p76
        %p197 = pneg %p107
        %p198 = pneg %p104
        %p199 = scmp.lt.s32.totalorder %s22, 1
        %s200 = scalar_select %p199, %s22, 1
        %p201 = scmp.lt.s32.totalorder %s23, 2
        %s202 = scalar_select %p201, %s23, 2
        %s203 = smul.addr %s200, 3
        %s204 = sadd.s32 %s202, %s203
        %s205 = smul.addr %s204, 8
        %s206 = scalar_lea.vmem %s2, %s205
        %p207 = pneg %p135
        %p208 = pneg %p132
        %s209 = sand.u32 %s122, 1
        %s210 = scalar_lea.sflag [#allocation3], %s209
        %s211 = sand.u32 %s122, 1
        %s212 = scalar_lea.vmem [#allocation2], %s211
        %p213 = scmp.lt.s32.totalorder %s22, 1
        %s214 = scalar_select %p213, %s22, 1
        %s215 = smul.addr %s214, 18
        %s216 = smul.addr %s215, 4
        %s217 = scalar_lea.vmem %s0, %s216
        %p218 = scmp.lt.s32.totalorder %s22, 1
        %s219 = scalar_select %p218, %s22, 1
        %p220 = scmp.lt.s32.totalorder %s23, 2
        %s221 = scalar_select %p220, %s23, 2
        %s222 = smul.addr %s219, 3
        %s223 = sadd.s32 %s221, %s222
        %s224 = smul.addr %s223, 2
        %s225 = scalar_lea.vmem %s1, %s224
        %p226 = scmp.lt.s32.totalorder %s22, 1
        %s227 = scalar_select %p226, %s22, 1
        %p228 = scmp.lt.s32.totalorder %s23, 2
        %s229 = scalar_select %p228, %s23, 2
        %s230 = smul.addr %s227, 3
        %s231 = sadd.s32 %s229, %s230
        %s232 = smul.addr %s231, 8
        %s233 = scalar_lea.vmem %s2, %s232
        %v235 = vlaneseq
        %v236 = vand.u32 %v235, 127
        %v237 = vcvt.s32.f32 %v236
        %s238 = smul.u32 %s23, 128
        %s239 = scvt.s32.f32 %s238
        %v240 = vstv %s239
        %v241 = vadd.f32 %v240, %v237
        %v242 = vadd.f32 %v241, 0.5
        %v243 = vmul.f32 %v242, 0.041666668
        %v244 = vfloor.f32 %v243
        %v245 = vmul.f32 %v244, 24.0
        %v246 = vsub.f32 %v241, %v245
        %v247 = vld [vmem:[%s225] sm:$0x1]
        %v248 = vld [vmem:[%s225 + $0x1] sm:$0x1]
        %v249 = vadd.f32 %v246, %v247
        %v250 = vadd.f32 %v244, %v248
        %v251 = vmax.f32 %v249, 0.0
        %v252 = vmin.f32 %v251, 23.0
        %v253 = vmax.f32 %v250, 0.0
        %v254 = vmin.f32 %v253, 15.0
        %v255 = vfloor.f32 %v252
        %v256 = vfloor.f32 %v254
        %v257 = vsub.f32 %v252, %v255
        %v258 = vsub.f32 1.0, %v257
        %v259 = vsub.f32 %v254, %v256
        %v260 = vsub.f32 1.0, %v259
        %v261 = vadd.f32 %v255, 1.0
        %v262 = vmin.f32 %v261, 23.0
        %v263 = vadd.f32 %v256, 1.0
        %v264 = vmin.f32 %v263, 15.0
        %v265 = vcvt.f32.s32.to.zero.pseudo %v255
        %v266 = vcvt.f32.s32.to.zero.pseudo %v262
        %v267 = vcvt.f32.s32.to.zero.pseudo %v256
        %v268 = vcvt.f32.s32.to.zero.pseudo %v264
        %v269 = vlaneseq
        %v270 = vshrl.u32 %v269, 7
        %v271 = vadd.s32 %v270, 8
        %v272 = vlaneseq
        %v273 = vshrl.u32 %v272, 7
        %v274 = vsub.s32 0, %v273
        %v275 = vrot.slane %v267, %v274
        %vm276 = vcmp.eq.s32.totalorder %v270, %v275
        %vm277 = vcmp.eq.s32.totalorder %v271, %v275
        %v278 = vlaneseq
        %v279 = vshrl.u32 %v278, 7
        %v280 = vsub.s32 0, %v279
        %v281 = vrot.slane %v260, %v280
        %v282 = vsel %vm276, %v281, 0.0
        %v283 = vsel %vm277, %v281, 0.0
        %v284 = vlaneseq
        %v285 = vshrl.u32 %v284, 7
        %v286 = vsub.s32 0, %v285
        %v287 = vrot.slane %v268, %v286
        %vm288 = vcmp.eq.s32.totalorder %v270, %v287
        %vm289 = vcmp.eq.s32.totalorder %v271, %v287
        %v290 = vlaneseq
        %v291 = vshrl.u32 %v290, 7
        %v292 = vsub.s32 0, %v291
        %v293 = vrot.slane %v259, %v292
        %v294 = vsel %vm288, %v293, 0.0
        %v295 = vsel %vm289, %v293, 0.0
        %v296 = vadd.f32 %v282, %v294
        %v297 = vadd.f32 %v283, %v295
        %v298 = vpack.c.bf16 %v297, %v296
        %v299 = vld [vmem:[%s217] sm:$0xf]
        %v300 = vld [vmem:[%s217 + $0x4] sm:$0xf]
        %v301 = vld [vmem:[%s217 + $0x8] sm:$0xf]
        %v302 = vld [vmem:[%s217 + $0xc] sm:$0xf]
        %v303 = vld [vmem:[%s217 + $0x10] sm:$0xf]
        %v304 = vld [vmem:[%s217 + $0x14] sm:$0xf]
        %v305 = vld [vmem:[%s217 + $0x18] sm:$0xf]
        %v306 = vld [vmem:[%s217 + $0x1c] sm:$0xf]
        %v307 = vld [vmem:[%s217 + $0x20] sm:$0xf]
        %v308 = vld [vmem:[%s217 + $0x24] sm:$0xf]
        %v309 = vld [vmem:[%s217 + $0x28] sm:$0xf]
        %v310 = vld [vmem:[%s217 + $0x2c] sm:$0xf]
        %v311 = vld [vmem:[%s217 + $0x30] sm:$0xf]
        %v312 = vld [vmem:[%s217 + $0x34] sm:$0xf]
        %v313 = vld [vmem:[%s217 + $0x38] sm:$0xf]
        %v314 = vld [vmem:[%s217 + $0x3c] sm:$0xf]
        %v315 = vld [vmem:[%s217 + $0x40] sm:$0xf]
        %v316 = vld [vmem:[%s217 + $0x44] sm:$0xf]
        %v335 = vunpack.c.l.b16 %v299
        %v336 = vunpack.c.l.b16 %v300
        %v337 = vunpack.c.l.b16 %v301
        %v338 = vunpack.c.l.b16 %v302
        %v339 = vunpack.c.l.b16 %v303
        %v340 = vunpack.c.l.b16 %v304
        %v341 = vunpack.c.l.b16 %v305
        %v342 = vunpack.c.l.b16 %v306
        %v343 = vunpack.c.l.b16 %v307
        %v344 = vunpack.c.l.b16 %v308
        %v345 = vunpack.c.l.b16 %v309
        %v346 = vunpack.c.l.b16 %v310
        %v347 = vunpack.c.l.b16 %v311
        %v348 = vunpack.c.l.b16 %v312
        %v349 = vunpack.c.l.b16 %v313
        %v350 = vunpack.c.l.b16 %v314
        %v351 = vunpack.c.l.b16 %v315
        %v352 = vunpack.c.l.b16 %v316
        %v353 = vpack.c.b16 %v336, %v335
        %v354 = vpack.c.b16 %v338, %v337
        %v355 = vpack.c.b16 %v340, %v339
        %v356 = vpack.c.b16 %v342, %v341
        %v357 = vpack.c.b16 %v344, %v343
        %v358 = vpack.c.b16 %v346, %v345
        %v359 = vpack.c.b16 %v348, %v347
        %v360 = vpack.c.b16 %v350, %v349
        %v361 = vpack.c.b16 %v352, %v351
        %vm362 = vcmask 130048
        %v364 = vsel %vm362, %v353, 0
        %v367 = vsel %vm362, %v354, 0
        %v370 = vsel %vm362, %v355, 0
        %v373 = vsel %vm362, %v356, 0
        %v376 = vsel %vm362, %v357, 0
        %v379 = vsel %vm362, %v358, 0
        %v382 = vsel %vm362, %v359, 0
        %v385 = vsel %vm362, %v360, 0
        %v388 = vsel %vm362, %v361, 0
        %390 = vmatprep.subr.bf16.mxu0 0
        %391 = vmatpush1.bf16.msra.mxu0 %v298
        %392 = vmatprep.subr.bf16.mxu0 0
        %393 = vmatpush1.bf16.msra.mxu0 0
        %394 = vmatprep.subr.bf16.mxu0 0
        %395 = vmatpush1.bf16.msra.mxu0 0
        %396 = vmatprep.subr.bf16.mxu0 0
        %397 = vmatpush1.bf16.msra.mxu0 0
        %398 = vmatprep.subr.bf16.mxu0 0
        %399 = vmatpush1.bf16.msra.mxu0 0
        %400 = vmatprep.subr.bf16.mxu0 0
        %401 = vmatpush1.bf16.msra.mxu0 0
        %402 = vmatprep.subr.bf16.mxu0 0
        %403 = vmatpush1.bf16.msra.mxu0 0
        %404 = vmatprep.subr.bf16.mxu0 0
        %405 = vmatpush1.bf16.msra.mxu0 0
        %406 = vmatprep.subr.bf16.mxu0 0
        %407 = vmatpush1.bf16.msra.mxu0 0
        %408 = vmatprep.subr.bf16.mxu0 0
        %409 = vmatpush1.bf16.msra.mxu0 0
        %410 = vmatprep.subr.bf16.mxu0 0
        %411 = vmatpush1.bf16.msra.mxu0 0
        %412 = vmatprep.subr.bf16.mxu0 0
        %413 = vmatpush1.bf16.msra.mxu0 0
        %414 = vmatprep.subr.bf16.mxu0 0
        %415 = vmatpush1.bf16.msra.mxu0 0
        %416 = vmatprep.subr.bf16.mxu0 0
        %417 = vmatpush1.bf16.msra.mxu0 0
        %418 = vmatprep.subr.bf16.mxu0 0
        %419 = vmatpush1.bf16.msra.mxu0 0
        %420 = vmatprep.subr.bf16.mxu0 0
        %421 = vmatpush1.bf16.msra.mxu0 0
        %422 = vmatprep.mubr.bf16.mxu0 0
        %423 = vmatmul.mubr.bf16.gmra.mrb[0].mxu0 %v364
        %v424 = vpop.f32.mrb[0].mxu0
        %v425 = vadd.f32 0.0, %v424
        %v426 = vpop.f32.mrb[0].mxu0
        %v427 = vpop.f32.mrb[0].mxu0
        %v428 = vadd.f32 0.0, %v427
        %v429 = vpop.f32.mrb[0].mxu0
        %430 = vmatprep.mubr.bf16.mxu0 0
        %431 = vmatmul.mubr.bf16.gmra.mrb[0].mxu0 %v367
        %v432 = vpop.f32.mrb[0].mxu0
        %v433 = vadd.f32 0.0, %v432
        %v434 = vpop.f32.mrb[0].mxu0
        %v435 = vpop.f32.mrb[0].mxu0
        %v436 = vadd.f32 0.0, %v435
        %v437 = vpop.f32.mrb[0].mxu0
        %438 = vmatprep.mubr.bf16.mxu0 0
        %439 = vmatmul.mubr.bf16.gmra.mrb[0].mxu0 %v370
        %v440 = vpop.f32.mrb[0].mxu0
        %v441 = vadd.f32 0.0, %v440
        %v442 = vpop.f32.mrb[0].mxu0
        %v443 = vpop.f32.mrb[0].mxu0
        %v444 = vadd.f32 0.0, %v443
        %v445 = vpop.f32.mrb[0].mxu0
        %446 = vmatprep.mubr.bf16.mxu0 0
        %447 = vmatmul.mubr.bf16.gmra.mrb[0].mxu0 %v373
        %v448 = vpop.f32.mrb[0].mxu0
        %v449 = vadd.f32 0.0, %v448
        %v450 = vpop.f32.mrb[0].mxu0
        %v451 = vpop.f32.mrb[0].mxu0
        %v452 = vadd.f32 0.0, %v451
        %v453 = vpop.f32.mrb[0].mxu0
        %454 = vmatprep.mubr.bf16.mxu0 0
        %455 = vmatmul.mubr.bf16.gmra.mrb[0].mxu0 %v376
        %v456 = vpop.f32.mrb[0].mxu0
        %v457 = vadd.f32 0.0, %v456
        %v458 = vpop.f32.mrb[0].mxu0
        %v459 = vpop.f32.mrb[0].mxu0
        %v460 = vadd.f32 0.0, %v459
        %v461 = vpop.f32.mrb[0].mxu0
        %462 = vmatprep.mubr.bf16.mxu0 0
        %463 = vmatmul.mubr.bf16.gmra.mrb[0].mxu0 %v379
        %v464 = vpop.f32.mrb[0].mxu0
        %v465 = vadd.f32 0.0, %v464
        %v466 = vpop.f32.mrb[0].mxu0
        %v467 = vpop.f32.mrb[0].mxu0
        %v468 = vadd.f32 0.0, %v467
        %v469 = vpop.f32.mrb[0].mxu0
        %470 = vmatprep.mubr.bf16.mxu0 0
        %471 = vmatmul.mubr.bf16.gmra.mrb[0].mxu0 %v382
        %v472 = vpop.f32.mrb[0].mxu0
        %v473 = vadd.f32 0.0, %v472
        %v474 = vpop.f32.mrb[0].mxu0
        %v475 = vpop.f32.mrb[0].mxu0
        %v476 = vadd.f32 0.0, %v475
        %v477 = vpop.f32.mrb[0].mxu0
        %478 = vmatprep.mubr.bf16.mxu0 0
        %479 = vmatmul.mubr.bf16.gmra.mrb[0].mxu0 %v385
        %v480 = vpop.f32.mrb[0].mxu0
        %v481 = vadd.f32 0.0, %v480
        %v482 = vpop.f32.mrb[0].mxu0
        %v483 = vpop.f32.mrb[0].mxu0
        %v484 = vadd.f32 0.0, %v483
        %v485 = vpop.f32.mrb[0].mxu0
        %486 = vmatprep.mubr.bf16.mxu0 0
        %487 = vmatmul.mubr.bf16.gmra.mrb[0].mxu0 %v388
        %v488 = vpop.f32.mrb[0].mxu0
        %v489 = vadd.f32 0.0, %v488
        %v490 = vpop.f32.mrb[0].mxu0
        %v491 = vpop.f32.mrb[0].mxu0
        %v492 = vadd.f32 0.0, %v491
        %v493 = vpop.f32.mrb[0].mxu0
        %494 = vdwg.mxu0
        %v495 = vadd.s32 %v270, 16
        %v496 = vlaneseq
        %v497 = vshrl.u32 %v496, 7
        %v498 = vsub.s32 0, %v497
        %v499 = vrot.slane %v265, %v498
        %vm500 = vcmp.eq.s32.totalorder %v270, %v499
        %vm501 = vcmp.eq.s32.totalorder %v271, %v499
        %vm502 = vcmp.eq.s32.totalorder %v495, %v499
        %v503 = vlaneseq
        %v504 = vshrl.u32 %v503, 7
        %v505 = vsub.s32 0, %v504
        %v506 = vrot.slane %v258, %v505
        %v507 = vsel %vm500, %v506, 0.0
        %v508 = vsel %vm501, %v506, 0.0
        %v509 = vsel %vm502, %v506, 0.0
        %v510 = vlaneseq
        %v511 = vshrl.u32 %v510, 7
        %v512 = vsub.s32 0, %v511
        %v513 = vrot.slane %v266, %v512
        %vm514 = vcmp.eq.s32.totalorder %v270, %v513
        %vm515 = vcmp.eq.s32.totalorder %v271, %v513
        %vm516 = vcmp.eq.s32.totalorder %v495, %v513
        %v517 = vlaneseq
        %v518 = vshrl.u32 %v517, 7
        %v519 = vsub.s32 0, %v518
        %v520 = vrot.slane %v257, %v519
        %v521 = vsel %vm514, %v520, 0.0
        %v522 = vsel %vm515, %v520, 0.0
        %v523 = vsel %vm516, %v520, 0.0
        %v524 = vadd.f32 %v507, %v521
        %v525 = vadd.f32 %v508, %v522
        %v526 = vadd.f32 %v509, %v523
        %v527 = vmul.f32 %v425, %v524
        %v528 = vmul.f32 %v428, %v525
        %v529 = vmul.f32 %v433, %v526
        %v530 = vadd.f32 %v527, %v528
        %v531 = vadd.f32 %v530, %v529
        %v532 = vrot.slane %v531, 4
        %v533 = vadd.f32 %v531, %v532
        %v534 = vrot.slane %v533, 2
        %v535 = vadd.f32 %v533, %v534
        %v536 = vrot.slane %v535, 1
        %v537 = vadd.f32 %v535, %v536
        %v538 = vmul.f32 %v436, %v524
        %v539 = vmul.f32 %v441, %v525
        %v540 = vmul.f32 %v444, %v526
        %v541 = vadd.f32 %v538, %v539
        %v542 = vadd.f32 %v541, %v540
        %v543 = vrot.slane %v542, 4
        %v544 = vadd.f32 %v542, %v543
        %v545 = vrot.slane %v544, 2
        %v546 = vadd.f32 %v544, %v545
        %v547 = vrot.slane %v546, 1
        %v548 = vadd.f32 %v546, %v547
        %v549 = vmul.f32 %v449, %v524
        %v550 = vmul.f32 %v452, %v525
        %v551 = vmul.f32 %v457, %v526
        %v552 = vadd.f32 %v549, %v550
        %v553 = vadd.f32 %v552, %v551
        %v554 = vrot.slane %v553, 4
        %v555 = vadd.f32 %v553, %v554
        %v556 = vrot.slane %v555, 2
        %v557 = vadd.f32 %v555, %v556
        %v558 = vrot.slane %v557, 1
        %v559 = vadd.f32 %v557, %v558
        %v560 = vmul.f32 %v460, %v524
        %v561 = vmul.f32 %v465, %v525
        %v562 = vmul.f32 %v468, %v526
        %v563 = vadd.f32 %v560, %v561
        %v564 = vadd.f32 %v563, %v562
        %v565 = vrot.slane %v564, 4
        %v566 = vadd.f32 %v564, %v565
        %v567 = vrot.slane %v566, 2
        %v568 = vadd.f32 %v566, %v567
        %v569 = vrot.slane %v568, 1
        %v570 = vadd.f32 %v568, %v569
        %v571 = vmul.f32 %v473, %v524
        %v572 = vmul.f32 %v476, %v525
        %v573 = vmul.f32 %v481, %v526
        %v574 = vadd.f32 %v571, %v572
        %v575 = vadd.f32 %v574, %v573
        %v576 = vrot.slane %v575, 4
        %v577 = vadd.f32 %v575, %v576
        %v578 = vrot.slane %v577, 2
        %v579 = vadd.f32 %v577, %v578
        %v580 = vrot.slane %v579, 1
        %v581 = vadd.f32 %v579, %v580
        %v582 = vmul.f32 %v484, %v524
        %v583 = vmul.f32 %v489, %v525
        %v584 = vmul.f32 %v492, %v526
        %v585 = vadd.f32 %v582, %v583
        %v586 = vadd.f32 %v585, %v584
        %v587 = vrot.slane %v586, 4
        %v588 = vadd.f32 %v586, %v587
        %v589 = vrot.slane %v588, 2
        %v590 = vadd.f32 %v588, %v589
        %v591 = vrot.slane %v590, 1
        %v592 = vadd.f32 %v590, %v591
        %vm593 = vcmask 1040384
        %v594 = vsel %vm593, %v537, %v548
        %vm595 = vcmask 1041408
        %v596 = vsel %vm595, %v594, %v559
        %vm597 = vcmask 1042432
        %v598 = vsel %vm597, %v596, %v570
        %vm599 = vcmask 1043456
        %v600 = vsel %vm599, %v598, %v581
        %vm601 = vcmask 1044480
        %v602 = vsel %vm601, %v600, %v592
        %603 = vst [vmem:[%s233] sm:$0x3f] %v602
        %v604 = vround.ne.pseudo %v249
        %v605 = vround.ne.pseudo %v250
        %vm606 = vcmp.ge.f32.partialorder %v604, 0.0
        %vm607 = vcmp.le.f32.partialorder %v604, 23.0
        %vm608 = vmand %vm606, %vm607
        %vm609 = vcmp.ge.f32.partialorder %v605, 0.0
        %vm610 = vmand %vm608, %vm609
        %vm611 = vcmp.le.f32.partialorder %v605, 15.0
        %vm612 = vmand %vm610, %vm611
        %v613 = vsel %vm612, 1, 0
        %v614 = vcvt.s32.f32 %v613
        %615 = vst [vmem:[%s212] sm:$0x1] %v614
        %p616 = scmp.lt.s32.totalorder %s22, 1
        %s617 = scalar_select %p616, %s22, 1
        %p618 = scmp.lt.s32.totalorder %s23, 2
        %s619 = scalar_select %p618, %s23, 2
        %s620 = smul.addr %s617, 3
        %s621 = sadd.s32 %s619, %s620
        %s622 = smul.addr %s621, 8
        %s623 = scalar_lea.vmem %s2, %s622
        %s624 = sand.u32 %s122, 1
        %s625 = scalar_lea.sflag [#allocation3], %s624
        %s626 = sand.u32 %s122, 1
        %s627 = scalar_lea.vmem [#allocation2], %s626
        // Predicated region
        $region29: #{tpu_custom_call.1} parent=27 // pred_check
          %p628 = pneg %p104
        $region30: #{tpu_custom_call.1} parent=27 // pred_check_branch
          %630 = sbr.rel (%p628) target = $region32
        $region31: #{tpu_custom_call.1} parent=27 // pred_region
          _
        $region32: #{tpu_custom_call.1} parent=27 // pred_fallthru
          _
        // Predicated region
        $region33: #{tpu_custom_call.1} parent=27 // pred_check
          %p631 = pneg %p132
        $region34: #{tpu_custom_call.1} parent=27 // pred_check_branch
          %633 = sbr.rel (%p631) target = $region36
        $region35: #{tpu_custom_call.1} parent=27 // pred_region
          %s635 = ssub.s32 16, 16
          %636 = vsyncadd %s625, %s635
          %s637 = smul.addr %s22, 3
          %s638 = sadd.s32 %s23, %s637
          %s639 = smul.addr %s638, 16
          %s640 = scalar_lea.hbm %s3, %s639
          %s642 = sshll.u32 %s627, 4
          %s643 = int_to_ptr.vmem [resolvable:$true] %s642
          %645 = dma.vmem_to_hbm [thread:$0]  %s643, 16, %s640, %s625
        $region36: #{tpu_custom_call.1} parent=27 // pred_fallthru
          _
      $region28: #{tpu_custom_call.1} parent=5 // pred_fallthru
        _
      %p646 = scmp.le.s32.totalorder 2, %s13
      // Predicated region
      $region37: #{tpu_custom_call.1} parent=5 // pred_check
        %p647 = pneg %p646
      $region38: #{tpu_custom_call.1} parent=5 // pred_check_branch
        %649 = sbr.rel (%p647) target = $region40
      $region39: #{tpu_custom_call.1} parent=5 // pred_region
        %s650 = ssub.s32 %s13, 2
        // Predicated region
        $region41: #{tpu_custom_call.1} parent=39 // pred_check
          %p651 = pneg %p110
        $region42: #{tpu_custom_call.1} parent=39 // pred_check_branch
          %653 = sbr.rel (%p651) target = $region44
        $region43: #{tpu_custom_call.1} parent=39 // pred_region
          %p654 = scmp.lt.s32.totalorder %s24, 1
          %s655 = scalar_select %p654, %s24, 1
          %p656 = scmp.lt.s32.totalorder %s25, 2
          %s657 = scalar_select %p656, %s25, 2
          %s658 = smul.addr %s655, 3
          %s659 = sadd.s32 %s657, %s658
          %s660 = smul.addr %s659, 8
          %s661 = scalar_lea.vmem %s2, %s660
        $region44: #{tpu_custom_call.1} parent=39 // pred_fallthru
          _
        // Predicated region
        $region45: #{tpu_custom_call.1} parent=39 // pred_check
          %p662 = pneg %p138
        $region46: #{tpu_custom_call.1} parent=39 // pred_check_branch
          %664 = sbr.rel (%p662) target = $region48
        $region47: #{tpu_custom_call.1} parent=39 // pred_region
          %s665 = sand.u32 %s123, 1
          %s666 = scalar_lea.sflag [#allocation3], %s665
          %s667 = sand.u32 %s123, 1
          %s668 = scalar_lea.vmem [#allocation2], %s667
          %669 = dma.done %s666, 16
        $region48: #{tpu_custom_call.1} parent=39 // pred_fallthru
          _
      $region40: #{tpu_custom_call.1} parent=5 // pred_fallthru
        _
    $region6: #{tpu_custom_call.1} parent=1 // loop_footer
      %s17 = sadd.s32 1, %s13
    $region7: #{tpu_custom_call.1} parent=1 // loop_footer_branch
      %12 = sbr.rel target = $region3
    $region8: #{tpu_custom_call.1} parent=1 // loop_exit
      _
    %670 = vsyncpa [#allocation3], 1
    %s671 = scalar_lea.sflag [#allocation3], 1
    %672 = vsyncpa %s671, 1

</llo_original>
